<compile_context>
chip_gen: v7x
topology: tpu7x:2x2x1
jax: 0.10.0
libtpu: 0.0.40
codegen_flags: <defaults>
</compile_context>

<pallas_src>
import functools

import jax
import jax.numpy as jnp
from jax.experimental import pallas as pl
from jax.experimental.pallas import tpu as pltpu

_LANES = 128
_SUBLANES = 8
_NCORES = 2  # leading "parallel" grid axis; used by v7x's 2 TCs, ~free on 1-TC chips


def _round_up(x: int, m: int) -> int:
    return ((x + m - 1) // m) * m


def _cdiv(a: int, b: int) -> int:
    return (a + b - 1) // b


def _vmem_capacity_bytes() -> int:
    """Best-effort VMEM capacity query; conservative (v7x-sized) fallback."""
    try:
        info = pltpu.get_tpu_info()
        cap = getattr(info, "vmem_capacity_bytes", None)
        if cap:
            return int(cap)
    except Exception:
        pass
    return 64 * 1024 * 1024


def _tsp_loss_c_kernel(x_ref, o_ref, acc_ref, *, inv_batch):
    # x_ref:   (4, blk, 128) block of the stacked [s, d, t0, t1] planes
    # o_ref:   (8, 128) per-core output tile (leading core dim squeezed)
    # acc_ref: (8, 128) f32 VMEM accumulator (per-core scratch)
    i = pl.program_id(1)

    @pl.when(i == 0)
    def _init():
        acc_ref[...] = jnp.zeros_like(acc_ref)

    # Cast on loaded vregs; keep the inner loop to sub/mul/add (pure VPU).
    s = x_ref[0].astype(jnp.float32)
    d = x_ref[1].astype(jnp.float32)
    t0 = x_ref[2].astype(jnp.float32)
    t1 = x_ref[3].astype(jnp.float32)

    es = s - t0
    ed = d - t1
    r = es * es + ed * ed  # (blk, 128)

    # Fold groups of 8 sublanes into the (8,128) vector accumulator.
    # The reshape only splits the sublane dim (tile-preserving, no data move);
    # the axis-0 sum is a tree of vreg adds on the VPU.
    n = r.shape[0] // _SUBLANES
    acc_ref[...] += jnp.sum(r.reshape(n, _SUBLANES, r.shape[1]), axis=0)

    @pl.when(i == pl.num_programs(1) - 1)
    def _finalize():
        # Single scale by 1/batch per core; cross-lane reduce happens in the
        # (tiny) wrapper-side sum of the (2, 8, 128) partials.
        o_ref[...] = acc_ref[...] * jnp.float32(inv_batch)


def tsp_loss_c(output_S, output_D, X, targets, *, block_rows=None, force_kernel=False):
    """Pallas equivalent of TSP_Loss_C.forward. X is unused (as in the module)."""
    del X  # unused by the reference forward pass

    batch = output_S.shape[0]

    # Common compute dtype for the stacked operand (stay narrow for bf16/fp16).
    dt = jnp.result_type(output_S.dtype, output_D.dtype, targets.dtype)
    if (not jnp.issubdtype(dt, jnp.floating)) or jnp.dtype(dt).itemsize > 4:
        dt = jnp.dtype(jnp.float32)
    itemsize = jnp.dtype(dt).itemsize
    sub = {4: 8, 2: 16, 1: 32}.get(itemsize, 8)  # native sublane tile per dtype

    s = output_S.reshape(batch).astype(dt)
    d = output_D.reshape(batch).astype(dt)
    t0 = targets[:, 0].astype(dt)
    t1 = targets[:, 1].astype(dt)

    rows = _cdiv(batch, _LANES)  # lane-dense rows after flattening

    # --- generation / dtype / padding aware block sizing --------------------
    vmem_cap = _vmem_capacity_bytes()
    if block_rows is not None:
        blk = max(sub, _round_up(int(block_rows), sub))
    else:
        # v5e/v6e (128 MiB VMEM) -> bigger tiles; v7x (64 MiB) -> capped.
        blk_max = 8192 if vmem_cap >= 100 * 1024 * 1024 else 4096
        blk = min(blk_max, _round_up(max(_cdiv(rows, _NCORES), 1), sub))
        blk = max(sub, blk)
        # Shrink when whole-block padding would waste >~12% of the HBM read.
        while blk > sub:
            padded = _round_up(rows, blk * _NCORES)
            if padded - rows <= max(rows // 8, 0):
                break
            blk = max(sub, _round_up(blk // 2, sub))

    rows_padded = _round_up(max(rows, 1), blk * _NCORES)
    steps = rows_padded // (blk * _NCORES)
    total = rows_padded * _LANES

    # --- small-batch fast path: launch overhead dominates --------------------
    if (not force_kernel) and (_NCORES * steps <= 2):
        s32 = s.astype(jnp.float32)
        d32 = d.astype(jnp.float32)
        t032 = t0.astype(jnp.float32)
        t132 = t1.astype(jnp.float32)
        return jnp.sum((s32 - t032) ** 2 + (d32 - t132) ** 2) / batch

    # --- single stacked, padded, lane-dense operand --------------------------
    # Zero padding is numerically exact: padded (s-t0) and (d-t1) are both 0.
    vals = jnp.stack([s, d, t0, t1], axis=0)                 # (4, batch)
    vals = jnp.pad(vals, ((0, 0), (0, total - batch)))       # (4, total)
    vals = vals.reshape(4, rows_padded, _LANES)              # (4, rows_padded, 128)

    kernel = functools.partial(_tsp_loss_c_kernel, inv_batch=1.0 / float(batch))

    bytes_per_buf = 4 * blk * _LANES * itemsize
    vmem_limit = 2 * bytes_per_buf + (4 << 20)  # double-buffered input + headroom
    vmem_limit = max(16 << 20, min(vmem_limit, vmem_cap - (8 << 20), 96 << 20))

    out = pl.pallas_call(
        kernel,
        out_shape=jax.ShapeDtypeStruct((_NCORES, _SUBLANES, _LANES), jnp.float32),
        grid_spec=pltpu.PrefetchScalarGridSpec(
            num_scalar_prefetch=0,
            grid=(_NCORES, steps),
            in_specs=[
                pl.BlockSpec((4, blk, _LANES), lambda c, i: (0, c * steps + i, 0)),
            ],
            out_specs=pl.BlockSpec((None, _SUBLANES, _LANES), lambda c, i: (c, 0, 0)),
            scratch_shapes=[pltpu.VMEM((_SUBLANES, _LANES), jnp.float32)],
        ),
        compiler_params=pltpu.CompilerParams(
            dimension_semantics=("parallel", "arbitrary"),
            vmem_limit_bytes=int(vmem_limit),
        ),
    )(vals)

    # Tiny cross-lane reduce of the per-core partials (already scaled by 1/batch).
    return jnp.sum(out)


def _reference_loss(output_S, output_D, targets):
    s32 = output_S.astype(jnp.float32)
    d32 = output_D.astype(jnp.float32)
    t32 = targets.astype(jnp.float32)
    return jnp.sum(
        (s32 - t32[:, 0:1]) ** 2 + (d32 - t32[:, 1:2]) ** 2
    ) / output_S.shape[0]


if __name__ == "__main__":
    key = jax.random.PRNGKey(0)
    k1, k2, k3, k4, k5, k6, k7, k8 = jax.random.split(key, 8)

    # --- Small case matching the module docstring shapes ---
    batch = 8
    cls_dim = 4
    output_S = jax.random.normal(k1, (batch, 1), dtype=jnp.float32)
    output_D = jax.random.normal(k2, (batch, 1), dtype=jnp.float32)
    # X is a list of two (batch, cls_dim) tensors per the module docstring (unused).
    X = [
        jax.random.normal(k3, (batch, cls_dim), dtype=jnp.float32),
        jax.random.normal(k4, (batch, cls_dim), dtype=jnp.float32),
    ]
    targets = jax.random.normal(k5, (batch, 3), dtype=jnp.float32)

    # force_kernel=True so the Pallas path itself is exercised at small shape
    # (the default dispatch would take the small-batch jnp fast path here).
    loss = jax.block_until_ready(
        tsp_loss_c(output_S, output_D, X, targets, force_kernel=True)
    )
    ref = _reference_loss(output_S, output_D, targets)
    assert jnp.allclose(loss, ref, rtol=1e-5, atol=1e-5), (loss, ref)

    # --- Larger, non-aligned case: multi-step grid + both "core" partials ---
    batch2 = 2055  # not a multiple of 128 -> zero padding + multi-step grid
    output_S2 = jax.random.normal(k6, (batch2, 1), dtype=jnp.float32)
    output_D2 = jax.random.normal(k7, (batch2, 1), dtype=jnp.float32)
    targets2 = jax.random.normal(k8, (batch2, 3), dtype=jnp.float32)

    loss2 = jax.block_until_ready(tsp_loss_c(output_S2, output_D2, None, targets2))
    ref2 = _reference_loss(output_S2, output_D2, targets2)
    assert jnp.allclose(loss2, ref2, rtol=1e-5, atol=1e-5), (loss2, ref2)

    print("KERNEL_OK")
</pallas_src>

<mosaic_0001>
module attributes {stable_mosaic.version = 11 : i64} {
  func.func @_tsp_loss_c_kernel(%arg0: i32, %arg1: i32, %arg2: memref<4x8x128xf32, #tpu.memory_space<vmem>>, %arg3: memref<1x8x128xf32, #tpu.memory_space<vmem>>, %arg4: memref<8x128xf32, #tpu.memory_space<vmem>>) attributes {dimension_semantics = [#tpu.dimension_semantics<parallel>, #tpu.dimension_semantics<arbitrary>], iteration_bounds = array<i64: 2, 1>, scalar_prefetch = 0 : i64, scratch_operands = 1 : i64, tpu.core_type = #tpu.core_type<tc>, window_params = [{transform_indices = @transform_0, window_bounds = array<i64: 4, 8, 128>}, {transform_indices = @transform_1, window_bounds = array<i64: 1, 8, 128>}]} {
    %c0_i32 = arith.constant 0 : i32
    %0 = arith.cmpi eq, %arg1, %c0_i32 : i32
    %1 = arith.extui %0 : i1 to i32
    %c0_i32_0 = arith.constant 0 : i32
    %2 = arith.cmpi ne, %1, %c0_i32_0 : i32
    scf.if %2 {
      %cst_15 = arith.constant 0.000000e+00 : f32
      %24 = vector.broadcast %cst_15 : f32 to vector<8x128xf32>
      %c0_16 = arith.constant 0 : index
      %c0_17 = arith.constant 0 : index
      %25 = vector.load %arg4[%c0_16, %c0_17] : memref<8x128xf32, #tpu.memory_space<vmem>>, vector<8x128xf32>
      tpu.vector_store %arg4[%c0_16, %c0_17], %24 {strides = array<i32>} : memref<8x128xf32, #tpu.memory_space<vmem>>, vector<8x128xf32>,
    } else {
    }
    %c0 = arith.constant 0 : index
    %c0_1 = arith.constant 0 : index
    %c0_2 = arith.constant 0 : index
    %3 = vector.load %arg2[%c0, %c0_1, %c0_2] : memref<4x8x128xf32, #tpu.memory_space<vmem>>, vector<1x8x128xf32>
    %4 = vector.shape_cast %3 : vector<1x8x128xf32> to vector<8x128xf32>
    %c1 = arith.constant 1 : index
    %c0_3 = arith.constant 0 : index
    %c0_4 = arith.constant 0 : index
    %5 = vector.load %arg2[%c1, %c0_3, %c0_4] : memref<4x8x128xf32, #tpu.memory_space<vmem>>, vector<1x8x128xf32>
    %6 = vector.shape_cast %5 : vector<1x8x128xf32> to vector<8x128xf32>
    %c2 = arith.constant 2 : index
    %c0_5 = arith.constant 0 : index
    %c0_6 = arith.constant 0 : index
    %7 = vector.load %arg2[%c2, %c0_5, %c0_6] : memref<4x8x128xf32, #tpu.memory_space<vmem>>, vector<1x8x128xf32>
    %8 = vector.shape_cast %7 : vector<1x8x128xf32> to vector<8x128xf32>
    %c3 = arith.constant 3 : index
    %c0_7 = arith.constant 0 : index
    %c0_8 = arith.constant 0 : index
    %9 = vector.load %arg2[%c3, %c0_7, %c0_8] : memref<4x8x128xf32, #tpu.memory_space<vmem>>, vector<1x8x128xf32>
    %10 = vector.shape_cast %9 : vector<1x8x128xf32> to vector<8x128xf32>
    %11 = arith.subf %4, %8 : vector<8x128xf32>
    %12 = arith.subf %6, %10 : vector<8x128xf32>
    %13 = arith.mulf %11, %11 : vector<8x128xf32>
    %14 = arith.mulf %12, %12 : vector<8x128xf32>
    %15 = arith.addf %13, %14 : vector<8x128xf32>
    %c0_9 = arith.constant 0 : index
    %c0_10 = arith.constant 0 : index
    %16 = vector.load %arg4[%c0_9, %c0_10] : memref<8x128xf32, #tpu.memory_space<vmem>>, vector<8x128xf32>
    %17 = vector.shape_cast %15 : vector<8x128xf32> to vector<1x8x128xf32>
    %cst = arith.constant dense<0.000000e+00> : vector<8x128xf32>
    %18 = vector.multi_reduction <add>, %17, %cst [0] : vector<1x8x128xf32> to vector<8x128xf32>
    %19 = arith.addf %16, %18 : vector<8x128xf32>
    %c0_11 = arith.constant 0 : index
    %c0_12 = arith.constant 0 : index
    %20 = vector.load %arg4[%c0_11, %c0_12] : memref<8x128xf32, #tpu.memory_space<vmem>>, vector<8x128xf32>
    tpu.vector_store %arg4[%c0_11, %c0_12], %19 {strides = array<i32>} : memref<8x128xf32, #tpu.memory_space<vmem>>, vector<8x128xf32>,
    %c0_i32_13 = arith.constant 0 : i32
    %21 = arith.cmpi eq, %arg1, %c0_i32_13 : i32
    %22 = arith.extui %21 : i1 to i32
    %c0_i32_14 = arith.constant 0 : i32
    %23 = arith.cmpi ne, %22, %c0_i32_14 : i32
    scf.if %23 {
      %c0_15 = arith.constant 0 : index
      %c0_16 = arith.constant 0 : index
      %24 = vector.load %arg4[%c0_15, %c0_16] : memref<8x128xf32, #tpu.memory_space<vmem>>, vector<8x128xf32>
      %cst_17 = arith.constant 1.250000e-01 : f32
      %25 = vector.broadcast %cst_17 : f32 to vector<8x128xf32>
      %26 = arith.mulf %24, %25 : vector<8x128xf32>
      %c0_18 = arith.constant 0 : index
      %c0_19 = arith.constant 0 : index
      %c0_20 = arith.constant 0 : index
      %27 = vector.load %arg3[%c0_18, %c0_19, %c0_20] : memref<1x8x128xf32, #tpu.memory_space<vmem>>, vector<1x8x128xf32>
      %28 = vector.shape_cast %27 : vector<1x8x128xf32> to vector<8x128xf32>
      %29 = vector.shape_cast %26 : vector<8x128xf32> to vector<1x8x128xf32>
      tpu.vector_store %arg3[%c0_18, %c0_19, %c0_20], %29 {strides = array<i32>} : memref<1x8x128xf32, #tpu.memory_space<vmem>>, vector<1x8x128xf32>,
    } else {
    }
    return
  }
  func.func @transform_0(%arg0: i32, %arg1: i32) -> (i32, i32, i32) {
    %c1_i32 = arith.constant 1 : i32
    %0 = arith.muli %arg0, %c1_i32 : i32
    %1 = arith.addi %0, %arg1 : i32
    %c0_i32 = arith.constant 0 : i32
    %c0_i32_0 = arith.constant 0 : i32
    %c0_i32_1 = arith.constant 0 : i32
    return %c0_i32, %1, %c0_i32_0 : i32, i32, i32
  }
  func.func @transform_1(%arg0: i32, %arg1: i32) -> (i32, i32, i32) {
    %c0_i32 = arith.constant 0 : i32
    %c0_i32_0 = arith.constant 0 : i32
    %c0_i32_1 = arith.constant 0 : i32
    return %arg0, %c0_i32, %c0_i32_0 : i32, i32, i32
  }
}

</mosaic_0001>

<llo_original>
// kernel: tpu_custom_call.1
$region0: #{tpu_custom_call.1}
  #allocation0 [shape = 'u32[]', space=smem, size = 0x4, offset = 0x4, fixed_abs, tag = 'smem constant byte address 0x4 - core index']
  #allocation1 [shape = 'u32[144,128]{1,0:T(1,128)}', space=vmem, size = 0x12000, scoped, tag = 'internal scratch']
  #allocation2 [shape = 'f32[8,128]{1,0:T(8,128)}', space=vmem, size = 0x1000, scoped, tag = 'scratch operand']
  %s0 = inlined_call_operand.hbm [shape: f32[4,16,128], index: 0, kind: input, shape index: {}]
  %s1 = inlined_call_operand.hbm [shape: f32[2,8,128], index: 1, kind: output, shape index: {}]
  %s2 = sld [smem:[#allocation0]]
  $region49: #{tpu_custom_call.1} parent=0
    _
  %s4 = ssub.s32 1, %s2
  %s5 = scalar_select 0, %s4, %s2
  $region1: #{tpu_custom_call.1} parent=0
    #allocation3 [shape = 'u8[32768]{0}', space=vmem, size = 0x8000, scoped, tag = 'input window, operand 0']
    #allocation4 [shape = 's32[2]{0}', space=sflag, size = 0x8, scoped, tag = 'scoped memory for tpu_custom_call.1']
    #allocation5 [shape = 's32[2]{0}', space=sflag, size = 0x8, scoped, tag = 'scoped memory for tpu_custom_call.1']
    #allocation6 [shape = 'u8[8192]{0}', space=vmem, size = 0x2000, scoped, tag = 'output window, operand 0']
    %6 = vsyncpa [#allocation4], 0
    %s7 = scalar_lea.sflag [#allocation4], 1
    %8 = vsyncpa %s7, 0
    %9 = vsyncpa [#allocation5], 0
    %s10 = scalar_lea.sflag [#allocation5], 1
    %11 = vsyncpa %s10, 0
    loop: start=0, step=1, limit=4
    $region2: #{tpu_custom_call.1} parent=1 // loop_pre_header
      _
    $region3: #{tpu_custom_call.1} parent=1 // loop_header
      %s13 = sphi 0, %s17
      %p14 = scmp.ge.s32.totalorder %s13, 4
      %s20 = sphi 0, %s32
      %s21 = sphi 0, %s28
      %s22 = sphi 0, %s20
      %s23 = sphi 0, %s21
      %s24 = sphi 0, %s22
      %s25 = sphi 0, %s23
      %s37 = sphi 0, %s39
      %s40 = sphi 0, %s37
      %s41 = sphi 0, %s40
      %s57 = sphi 0, %s41
      %s63 = sphi 0, %s65
      %s66 = sphi 0, %s63
      %s67 = sphi 0, %s66
      %s83 = sphi 0, %s67
    $region4: #{tpu_custom_call.1} parent=1 // loop_header_branch
      %16 = sbr.rel (%p14) target = $region8
    $region5: #{tpu_custom_call.1} parent=1 // loop_body
      %s18 = ssub.s32 %s13, 1
      %s19 = ssub.s32 %s13, 2
      %s26 = sadd.s32 1, %s21
      %p27 = scmp.ge.s32.totalorder %s26, 1
      %s28 = scalar_select %p27, 0, %s26
      %s29 = sadd.s32 1, %s20
      %s30 = scalar_select %p27, %s29, %s20
      %p31 = scmp.ge.s32.totalorder %s30, 2
      %s32 = scalar_select %p31, 0, %s30
      %s33 = sadd.s32 %s20, %s21
      %s34 = sadd.s32 %s32, %s28
      %s35 = ssub.s32 %s33, %s34
      %p36 = scmp.eq.s32.totalorder %s35, 0
      %s38 = sadd.s32 %s37, 1
      %s39 = scalar_select %p36, %s37, %s38
      %p42 = pneg %p36
      %p43 = scmp.eq.s32.totalorder %s13, 1
      %p44 = por %p42, %p43
      %p45 = scmp.ne.s32.totalorder %s37, %s40
      %p46 = scmp.eq.s32.totalorder %s13, 0
      %p47 = por %p45, %p46
      %p48 = scmp.ne.s32.totalorder %s37, %s40
      %p49 = scmp.eq.s32.totalorder %s18, 1
      %p50 = por %p48, %p49
      %p51 = scmp.ne.s32.totalorder %s40, %s41
      %p52 = scmp.eq.s32.totalorder %s18, 0
      %p53 = por %p51, %p52
      %p54 = scmp.ne.s32.totalorder %s40, %s41
      %p55 = scmp.eq.s32.totalorder %s19, 1
      %p56 = por %p54, %p55
      %p58 = scmp.ne.s32.totalorder %s41, %s57
      %p59 = scmp.eq.s32.totalorder %s19, 0
      %p60 = por %p58, %p59
      %s61 = ssub.s32 %s20, %s32
      %p62 = scmp.eq.s32.totalorder %s61, 0
      %s64 = sadd.s32 %s63, 1
      %s65 = scalar_select %p62, %s63, %s64
      %p68 = pneg %p62
      %p69 = scmp.eq.s32.totalorder %s13, 1
      %p70 = por %p68, %p69
      %p71 = scmp.ne.s32.totalorder %s63, %s66
      %p72 = scmp.eq.s32.totalorder %s13, 0
      %p73 = por %p71, %p72
      %p74 = scmp.ne.s32.totalorder %s63, %s66
      %p75 = scmp.eq.s32.totalorder %s18, 1
      %p76 = por %p74, %p75
      %p77 = scmp.ne.s32.totalorder %s66, %s67
      %p78 = scmp.eq.s32.totalorder %s18, 0
      %p79 = por %p77, %p78
      %p80 = scmp.ne.s32.totalorder %s66, %s67
      %p81 = scmp.eq.s32.totalorder %s19, 1
      %p82 = por %p80, %p81
      %p84 = scmp.ne.s32.totalorder %s67, %s83
      %p85 = scmp.eq.s32.totalorder %s19, 0
      %p86 = por %p84, %p85
      %p87 = scmp.le.s32.totalorder 1, %s13
      %p88 = scmp.lt.s32.totalorder %s13, 3
      %p89 = pnand %p87, %p88
      %p90 = pneg %p89
      // Predicated region
      $region9: #{tpu_custom_call.1} parent=5 // pred_check
        _
      $region10: #{tpu_custom_call.1} parent=5 // pred_check_branch
        %92 = sbr.rel (%p89) target = $region12
      $region11: #{tpu_custom_call.1} parent=5 // pred_region
        %s93 = ssub.s32 %s13, 1
      $region12: #{tpu_custom_call.1} parent=5 // pred_fallthru
        _
      %p94 = scmp.lt.s32.totalorder %s13, 2
      // Predicated region
      $region13: #{tpu_custom_call.1} parent=5 // pred_check
        %p95 = pneg %p94
      $region14: #{tpu_custom_call.1} parent=5 // pred_check_branch
        %97 = sbr.rel (%p95) target = $region16
      $region15: #{tpu_custom_call.1} parent=5 // pred_region
        // Predicated region
        $region17: #{tpu_custom_call.1} parent=15 // pred_check
          %p98 = pneg %p47
        $region18: #{tpu_custom_call.1} parent=15 // pred_check_branch
          %100 = sbr.rel (%p98) target = $region20
        $region19: #{tpu_custom_call.1} parent=15 // pred_region
          %s101 = sand.u32 %s37, 1
          %s102 = scalar_lea.sflag [#allocation4], %s101
          %s103 = sand.u32 %s37, 1
          %s104 = smul.addr %s103, 32
          %s105 = scalar_lea.vmem [#allocation3], %s104
          %s106 = sadd.s32 %s20, %s21
          %s108 = ssub.s32 512, 512
          %109 = vsyncadd %s102, %s108
          %s110 = smul.addr %s106, 128
          %s111 = scalar_lea.hbm %s0, %s110
          %s112 = sshll.u32 %s105, 4
          %s113 = int_to_ptr.vmem [resolvable:$true] %s112
          %118 = dma.hbm_to_vmem [thread:$0]  %s111, 512, %s113, %s102, 256, 128, 8
        $region20: #{tpu_custom_call.1} parent=15 // pred_fallthru
          _
      $region16: #{tpu_custom_call.1} parent=5 // pred_fallthru
        _
      %p119 = scmp.le.s32.totalorder 1, %s13
      %p120 = scmp.lt.s32.totalorder %s13, 3
      %p121 = pnand %p119, %p120
      %p122 = pneg %p121
      // Predicated region
      $region21: #{tpu_custom_call.1} parent=5 // pred_check
        _
      $region22: #{tpu_custom_call.1} parent=5 // pred_check_branch
        %124 = sbr.rel (%p121) target = $region24
      $region23: #{tpu_custom_call.1} parent=5 // pred_region
        %s125 = ssub.s32 %s13, 1
        %s126 = sand.u32 %s40, 1
        %s127 = scalar_lea.sflag [#allocation4], %s126
        %s128 = sand.u32 %s40, 1
        %s129 = smul.addr %s128, 32
        %s130 = scalar_lea.vmem [#allocation3], %s129
        // Predicated region
        $region25: #{tpu_custom_call.1} parent=23 // pred_check
          %p131 = pneg %p53
        $region26: #{tpu_custom_call.1} parent=23 // pred_check_branch
          %133 = sbr.rel (%p131) target = $region28
        $region27: #{tpu_custom_call.1} parent=23 // pred_region
          %134 = dma.done %s127, 512
        $region28: #{tpu_custom_call.1} parent=23 // pred_fallthru
          _
        %s135 = sand.u32 %s40, 1
        %s136 = scalar_lea.sflag [#allocation4], %s135
        %s137 = sand.u32 %s40, 1
        %s138 = smul.addr %s137, 32
        %s139 = scalar_lea.vmem [#allocation3], %s138
        %p140 = pneg %p53
        %p141 = pneg %p50
        %p142 = pneg %p79
        %p143 = pneg %p76
        %s144 = sand.u32 %s66, 1
        %s145 = scalar_lea.sflag [#allocation5], %s144
        %s146 = sand.u32 %s66, 1
        %s147 = smul.addr %s146, 8
        %s148 = scalar_lea.vmem [#allocation6], %s147
        %s149 = sadd.s32 %s22, %s23
        %p150 = scmp.eq.s32.totalorder %s23, 0
        // Predicated region
        $region29: #{tpu_custom_call.1} parent=23 // pred_check
          %p151 = pneg %p150
        $region30: #{tpu_custom_call.1} parent=23 // pred_check_branch
          %153 = sbr.rel (%p151) target = $region32
        $region31: #{tpu_custom_call.1} parent=23 // pred_region
          %154 = vst [vmem:[#allocation2] sm:$0xff] 0.0
        $region32: #{tpu_custom_call.1} parent=23 // pred_fallthru
          _
        %v155 = vld [vmem:[%s130] sm:$0xff]
        %s156 = scalar_lea.vmem %s130, 8 [#allocation3]
        %v157 = vld [vmem:[%s156] sm:$0xff]
        %s158 = scalar_lea.vmem %s130, 16 [#allocation3]
        %v159 = vld [vmem:[%s158] sm:$0xff]
        %s160 = scalar_lea.vmem %s130, 24 [#allocation3]
        %v161 = vld [vmem:[%s160] sm:$0xff]
        %v162 = vsub.f32 %v155, %v159
        %v163 = vsub.f32 %v157, %v161
        %v164 = vmul.f32 %v162, %v162
        %v165 = vmul.f32 %v163, %v163
        %v166 = vadd.f32 %v164, %v165
        %v167 = vld [vmem:[#allocation2] sm:$0xff]
        %v168 = vadd.f32 %v166, 0.0
        %v169 = vadd.f32 %v167, %v168
        %170 = vst [vmem:[#allocation2] sm:$0xff] %v169
        // Predicated region
        $region33: #{tpu_custom_call.1} parent=23 // pred_check
          %p171 = pneg %p150
        $region34: #{tpu_custom_call.1} parent=23 // pred_check_branch
          %173 = sbr.rel (%p171) target = $region36
        $region35: #{tpu_custom_call.1} parent=23 // pred_region
          %v174 = vld [vmem:[#allocation2] sm:$0xff]
          %v175 = vmul.f32 %v174, 0.125
          %176 = vst [vmem:[%s148] sm:$0xff] %v175
        $region36: #{tpu_custom_call.1} parent=23 // pred_fallthru
          _
        %s177 = sand.u32 %s66, 1
        %s178 = scalar_lea.sflag [#allocation5], %s177
        %s179 = sand.u32 %s66, 1
        %s180 = smul.addr %s179, 8
        %s181 = scalar_lea.vmem [#allocation6], %s180
        // Predicated region
        $region37: #{tpu_custom_call.1} parent=23 // pred_check
          %p182 = pneg %p76
        $region38: #{tpu_custom_call.1} parent=23 // pred_check_branch
          %184 = sbr.rel (%p182) target = $region40
        $region39: #{tpu_custom_call.1} parent=23 // pred_region
          %s186 = ssub.s32 128, 128
          %187 = vsyncadd %s178, %s186
          %s188 = smul.addr %s22, 128
          %s189 = scalar_lea.hbm %s1, %s188
          %s191 = sshll.u32 %s181, 4
          %s192 = int_to_ptr.vmem [resolvable:$true] %s191
          %194 = dma.vmem_to_hbm [thread:$0]  %s192, 128, %s189, %s178
        $region40: #{tpu_custom_call.1} parent=23 // pred_fallthru
          _
      $region24: #{tpu_custom_call.1} parent=5 // pred_fallthru
        _
      %p195 = scmp.le.s32.totalorder 2, %s13
      // Predicated region
      $region41: #{tpu_custom_call.1} parent=5 // pred_check
        %p196 = pneg %p195
      $region42: #{tpu_custom_call.1} parent=5 // pred_check_branch
        %198 = sbr.rel (%p196) target = $region44
      $region43: #{tpu_custom_call.1} parent=5 // pred_region
        %s199 = ssub.s32 %s13, 2
        // Predicated region
        $region45: #{tpu_custom_call.1} parent=43 // pred_check
          %p200 = pneg %p82
        $region46: #{tpu_custom_call.1} parent=43 // pred_check_branch
          %202 = sbr.rel (%p200) target = $region48
        $region47: #{tpu_custom_call.1} parent=43 // pred_region
          %s203 = sand.u32 %s67, 1
          %s204 = scalar_lea.sflag [#allocation5], %s203
          %s205 = sand.u32 %s67, 1
          %s206 = smul.addr %s205, 8
          %s207 = scalar_lea.vmem [#allocation6], %s206
          %208 = dma.done %s204, 128
        $region48: #{tpu_custom_call.1} parent=43 // pred_fallthru
          _
      $region44: #{tpu_custom_call.1} parent=5 // pred_fallthru
        _
    $region6: #{tpu_custom_call.1} parent=1 // loop_footer
      %s17 = sadd.s32 1, %s13
    $region7: #{tpu_custom_call.1} parent=1 // loop_footer_branch
      %12 = sbr.rel target = $region3
    $region8: #{tpu_custom_call.1} parent=1 // loop_exit
      _
    %209 = vsyncpa [#allocation4], 1
    %s210 = scalar_lea.sflag [#allocation4], 1
    %211 = vsyncpa %s210, 1
    %212 = vsyncpa [#allocation5], 1
    %s213 = scalar_lea.sflag [#allocation5], 1
    %214 = vsyncpa %s213, 1

</llo_original>
